<compile_context>
chip_gen: v5e
topology: v5e:2x2
jax: 0.10.0
libtpu: 0.0.40
codegen_flags: <defaults>
</compile_context>

<pallas_src>
import functools

import jax
import jax.numpy as jnp
from jax.experimental import pallas as pl
from jax.experimental.pallas import tpu as pltpu


# Per-input, per-block VMEM budget.  4 MiB amortizes the ~0.35 us per-grid-step
# overhead to <10% at v6e/v7x bandwidth; 2 inputs x 2 pipeline buffers
# (~16-18 MiB) fits every generation once vmem_limit_bytes is set explicitly.
_DEFAULT_MAX_BLOCK_BYTES = 4 * 1024 * 1024


@functools.lru_cache(maxsize=1)
def _num_tensorcores():
    """Best-effort count of TensorCores per device (1 if unknown)."""
    probes = []
    try:
        probes.append(pltpu.get_tpu_info())
    except Exception:
        pass
    try:
        probes.append(jax.devices()[0])
    except Exception:
        pass
    for obj in probes:
        for name in ("num_cores", "core_count", "num_tensorcores",
                     "tensorcores_per_chip", "cores_per_chip"):
            try:
                val = getattr(obj, name, None)
            except Exception:
                val = None
            if isinstance(val, int) and not isinstance(val, bool) and val >= 1:
                return val
    return 1


def _choose_tile_rows(h, w, itemsize, sublane, max_block_bytes):
    """Row tile that (a) is a multiple of the dtype's sublane packing (or the
    full H, which is always a legal block dim) and (b) keeps one input block
    under max_block_bytes so 2 inputs x 2 pipeline buffers fit VMEM."""
    max_rows = max(sublane, max_block_bytes // max(1, w * itemsize))
    if h <= max_rows:
        return h                                   # single full-H block
    tile = (max_rows // sublane) * sublane
    t = tile
    while t >= sublane:                            # prefer an exact divisor of H
        if h % t == 0:
            return t
        t -= sublane
    return tile                                    # no divisor: tail masked in-kernel


def _ct_loss_kernel(real_ref, fake_ref, out_ref, acc_ref, *,
                    inv_n, tile_h, total_rows, tiles_per_split, mask_tail):
    # real_ref / fake_ref: (TILE_H, W) blocks of the [0, 0, :, :] plane in VMEM
    # (native dtype).  acc_ref: lane-wide (1, W) f32 VMEM accumulator per core.
    i = pl.program_id(1)

    @pl.when(i == 0)
    def _init():
        acc_ref[...] = jnp.zeros_like(acc_ref)

    diff = jnp.abs(real_ref[...].astype(jnp.float32)
                   - fake_ref[...].astype(jnp.float32))
    if mask_tail:
        # Last row tile may run past H: zero the out-of-range rows.
        tile_idx = pl.program_id(0) * tiles_per_split + i
        rows = tile_idx * tile_h + jax.lax.broadcasted_iota(
            jnp.int32, diff.shape, 0)
        diff = jnp.where(rows < total_rows, diff, 0.0)

    # Hot loop: sublane-axis fold only (no cross-lane reduce, no scalar RMW).
    acc_ref[...] += jnp.sum(diff, axis=0, keepdims=True)

    @pl.when(i == pl.num_programs(1) - 1)
    def _finish():
        # Single cross-lane reduce + trace-time 1/(H*W) scale, once per split.
        out_ref[0, 0] = jnp.sum(acc_ref[...]) * inv_n


def ct_loss(real, fake, *, max_block_bytes=_DEFAULT_MAX_BLOCK_BYTES):
    """real, fake: (N, C, H, W).  Returns scalar f32 = L1(real[0,0], fake[0,0])."""
    assert real.ndim == 4 and fake.ndim == 4
    assert real.shape == fake.shape
    _, _, h, w = real.shape
    inv_n = 1.0 / float(h * w)

    # Lane-sparse planes (W < 128): one-off repack of the [0,0] plane into a
    # lane-dense slab so vreg loads/stores are unmasked.  For W >= 128 the
    # plane streams zero-copy straight out of the NCHW input.
    real_in, fake_in = real, fake
    h_eff, w_eff = h, w
    if w < 128 and h * w >= 128 and (h * w) % 128 == 0:
        h_eff, w_eff = (h * w) // 128, 128
        real_in = real[0, 0].reshape(1, 1, h_eff, w_eff)
        fake_in = fake[0, 0].reshape(1, 1, h_eff, w_eff)

    itemsize = max(real.dtype.itemsize, fake.dtype.itemsize)
    sublane = max(8, 32 // min(real.dtype.itemsize, fake.dtype.itemsize))
    tile_h = _choose_tile_rows(h_eff, w_eff, itemsize, sublane, max_block_bytes)
    num_tiles = -(-h_eff // tile_h)                # ceil-div
    mask_tail = (h_eff % tile_h) != 0

    # 2-way row split only when the part actually has >= 2 TensorCores
    # (megacore / v7x); on single-core chips the axis stays 1-wide.
    multi_core = _num_tensorcores() >= 2
    splits = 2 if (multi_core and num_tiles >= 2 and num_tiles % 2 == 0) else 1
    tiles_per_split = num_tiles // splits

    def in_index_map(s, i):
        # Select the [0, 0] plane; tile rows within it.
        return (0, 0, s * tiles_per_split + i, 0)

    in_spec = pl.BlockSpec(
        (pl.Squeezed(), pl.Squeezed(), tile_h, w_eff), in_index_map)
    out_spec = pl.BlockSpec((1, 1), lambda s, i: (s, 0),
                            memory_space=pltpu.SMEM)
    # NOTE: pipeline depth left at the default (2); with ~4 MiB blocks the DMA
    # time dominates per-step issue latency, so Buffered(3) buys little here.

    block_bytes = tile_h * w_eff * (real.dtype.itemsize + fake.dtype.itemsize)
    acc_bytes = 8 * w_eff * 4                       # (1, W) f32, sublane-padded
    vmem_need = 2 * block_bytes + acc_bytes + (2 << 20)   # 2 buffers + headroom
    compiler_kwargs = dict(dimension_semantics=("parallel", "arbitrary"))
    if vmem_need > (12 << 20):
        # Near/above v5e's 16 MiB scoped default: state the need explicitly,
        # capped well under v7x's 64 MiB physical VMEM.
        compiler_kwargs["vmem_limit_bytes"] = int(min(vmem_need, 56 << 20))

    kernel = functools.partial(
        _ct_loss_kernel, inv_n=inv_n, tile_h=tile_h, total_rows=h_eff,
        tiles_per_split=tiles_per_split, mask_tail=mask_tail)

    partials = pl.pallas_call(
        kernel,
        out_shape=jax.ShapeDtypeStruct((splits, 1), jnp.float32),
        grid=(splits, tiles_per_split),
        in_specs=[in_spec, in_spec],
        out_specs=out_spec,
        scratch_shapes=[pltpu.VMEM((1, w_eff), jnp.float32)],
        compiler_params=pltpu.CompilerParams(**compiler_kwargs),
        cost_estimate=pl.CostEstimate(
            flops=2 * h_eff * w_eff,
            transcendentals=0,
            bytes_accessed=h_eff * w_eff
            * (real.dtype.itemsize + fake.dtype.itemsize) + 4 * splits,
        ),
    )(real_in, fake_in)

    # Each partial is already scaled by 1/(H*W); their sum is the mean.
    return jnp.sum(partials)


if __name__ == "__main__":
    key = jax.random.PRNGKey(0)
    k1, k2, k3, k4, k5, k6 = jax.random.split(key, 6)

    # Shapes implied by the module's forward: NCHW; only the [0, 0] plane used.
    # W < 128 here, so this exercises the lane-dense repack path.
    real = jax.random.normal(k1, (2, 4, 16, 16), dtype=jnp.float32) * 100.0
    fake = jax.random.normal(k2, (2, 4, 16, 16), dtype=jnp.float32) * 100.0
    result = ct_loss(real, fake)
    jax.block_until_ready(result)
    ref = jnp.mean(jnp.abs(real[0, 0] - fake[0, 0]))
    assert jnp.allclose(result, ref, rtol=1e-4, atol=1e-4), (result, ref)

    # Tiled path: small forced block budget -> H=64 splits into 4 row tiles,
    # exercising the lane-wide accumulator across grid steps (and the 2-way
    # core split when the chip exposes 2 TensorCores).
    real2 = jax.random.normal(k3, (1, 2, 64, 128), dtype=jnp.float32) * 10.0
    fake2 = jax.random.normal(k4, (1, 2, 64, 128), dtype=jnp.float32) * 10.0
    result2 = ct_loss(real2, fake2, max_block_bytes=16 * 128 * 4)
    jax.block_until_ready(result2)
    ref2 = jnp.mean(jnp.abs(real2[0, 0] - fake2[0, 0]))
    assert jnp.allclose(result2, ref2, rtol=1e-4, atol=1e-4), (result2, ref2)

    # bf16 inputs: exercises dtype-aware (16-row) sublane tiling + f32 accum.
    real3 = (jax.random.normal(k5, (1, 3, 32, 256), dtype=jnp.float32) * 10.0
             ).astype(jnp.bfloat16)
    fake3 = (jax.random.normal(k6, (1, 3, 32, 256), dtype=jnp.float32) * 10.0
             ).astype(jnp.bfloat16)
    result3 = ct_loss(real3, fake3, max_block_bytes=16 * 256 * 2)
    jax.block_until_ready(result3)
    ref3 = jnp.mean(jnp.abs(real3[0, 0].astype(jnp.float32)
                            - fake3[0, 0].astype(jnp.float32)))
    assert jnp.allclose(result3, ref3, rtol=1e-3, atol=1e-3), (result3, ref3)

    print("KERNEL_OK")
</pallas_src>

<mosaic_0001>
module attributes {stable_mosaic.version = 11 : i64} {
  func.func @_ct_loss_kernel(%arg0: i32, %arg1: i32, %arg2: memref<1x1x2x128xf32, #tpu.memory_space<vmem>>, %arg3: memref<1x1x2x128xf32, #tpu.memory_space<vmem>>, %arg4: memref<1x1xf32, #tpu.memory_space<smem>>, %arg5: memref<1x128xf32, #tpu.memory_space<vmem>>) attributes {dimension_semantics = [#tpu.dimension_semantics<parallel>, #tpu.dimension_semantics<arbitrary>], iteration_bounds = array<i64: 1, 1>, scalar_prefetch = 0 : i64, scratch_operands = 1 : i64, tpu.core_type = #tpu.core_type<tc>, window_params = [{transform_indices = @transform_0, window_bounds = array<i64: 1, 1, 2, 128>}, {transform_indices = @transform_1, window_bounds = array<i64: 1, 1, 2, 128>}, {transform_indices = @transform_2, window_bounds = array<i64: 1, 1>}]} {
    %c0_i32 = arith.constant 0 : i32
    %0 = arith.cmpi eq, %arg1, %c0_i32 : i32
    %1 = arith.extui %0 : i1 to i32
    %c0_i32_0 = arith.constant 0 : i32
    %2 = arith.cmpi ne, %1, %c0_i32_0 : i32
    scf.if %2 {
      %cst_14 = arith.constant 0.000000e+00 : f32
      %17 = vector.broadcast %cst_14 : f32 to vector<1x128xf32>
      %c0_15 = arith.constant 0 : index
      %c0_16 = arith.constant 0 : index
      %18 = vector.load %arg5[%c0_15, %c0_16] : memref<1x128xf32, #tpu.memory_space<vmem>>, vector<1x128xf32>
      tpu.vector_store %arg5[%c0_15, %c0_16], %17 {strides = array<i32>} : memref<1x128xf32, #tpu.memory_space<vmem>>, vector<1x128xf32>,
    } else {
    }
    %c0 = arith.constant 0 : index
    %c0_1 = arith.constant 0 : index
    %c0_2 = arith.constant 0 : index
    %c0_3 = arith.constant 0 : index
    %3 = vector.load %arg2[%c0, %c0_1, %c0_2, %c0_3] : memref<1x1x2x128xf32, #tpu.memory_space<vmem>>, vector<1x1x2x128xf32>
    %4 = vector.shape_cast %3 : vector<1x1x2x128xf32> to vector<2x128xf32>
    %c0_4 = arith.constant 0 : index
    %c0_5 = arith.constant 0 : index
    %c0_6 = arith.constant 0 : index
    %c0_7 = arith.constant 0 : index
    %5 = vector.load %arg3[%c0_4, %c0_5, %c0_6, %c0_7] : memref<1x1x2x128xf32, #tpu.memory_space<vmem>>, vector<1x1x2x128xf32>
    %6 = vector.shape_cast %5 : vector<1x1x2x128xf32> to vector<2x128xf32>
    %7 = arith.subf %4, %6 : vector<2x128xf32>
    %8 = math.absf %7 : vector<2x128xf32>
    %c0_8 = arith.constant 0 : index
    %c0_9 = arith.constant 0 : index
    %9 = vector.load %arg5[%c0_8, %c0_9] : memref<1x128xf32, #tpu.memory_space<vmem>>, vector<1x128xf32>
    %cst = arith.constant dense<0.000000e+00> : vector<128xf32>
    %10 = vector.multi_reduction <add>, %8, %cst [0] : vector<2x128xf32> to vector<128xf32>
    %11 = vector.shape_cast %10 : vector<128xf32> to vector<1x128xf32>
    %12 = arith.addf %9, %11 : vector<1x128xf32>
    %c0_10 = arith.constant 0 : index
    %c0_11 = arith.constant 0 : index
    %13 = vector.load %arg5[%c0_10, %c0_11] : memref<1x128xf32, #tpu.memory_space<vmem>>, vector<1x128xf32>
    tpu.vector_store %arg5[%c0_10, %c0_11], %12 {strides = array<i32>} : memref<1x128xf32, #tpu.memory_space<vmem>>, vector<1x128xf32>,
    %c0_i32_12 = arith.constant 0 : i32
    %14 = arith.cmpi eq, %arg1, %c0_i32_12 : i32
    %15 = arith.extui %14 : i1 to i32
    %c0_i32_13 = arith.constant 0 : i32
    %16 = arith.cmpi ne, %15, %c0_i32_13 : i32
    scf.if %16 {
      %c0_14 = arith.constant 0 : index
      %c0_15 = arith.constant 0 : index
      %17 = vector.load %arg5[%c0_14, %c0_15] : memref<1x128xf32, #tpu.memory_space<vmem>>, vector<1x128xf32>
      %18 = vector.shape_cast %17 : vector<1x128xf32> to vector<1x1x128xf32>
      %cst_16 = arith.constant dense<0.000000e+00> : vector<1xf32>
      %19 = vector.multi_reduction <add>, %18, %cst_16 [1, 2] : vector<1x1x128xf32> to vector<1xf32>
      %20 = vector.shape_cast %19 : vector<1xf32> to vector<1x1x1xf32>
      %21 = vector.extract %20[0, 0, 0] : f32 from vector<1x1x1xf32>
      %cst_17 = arith.constant 3.906250e-03 : f32
      %22 = arith.mulf %21, %cst_17 : f32
      %c0_18 = arith.constant 0 : index
      %c0_19 = arith.constant 0 : index
      %23 = memref.load %arg4[%c0_18, %c0_19] : memref<1x1xf32, #tpu.memory_space<smem>>
      memref.store %22, %arg4[%c0_18, %c0_19] : memref<1x1xf32, #tpu.memory_space<smem>>
    } else {
    }
    return
  }
  func.func @transform_0(%arg0: i32, %arg1: i32) -> (i32, i32, i32, i32) {
    %c1_i32 = arith.constant 1 : i32
    %0 = arith.muli %arg0, %c1_i32 : i32
    %1 = arith.addi %0, %arg1 : i32
    %c0_i32 = arith.constant 0 : i32
    %c0_i32_0 = arith.constant 0 : i32
    %c0_i32_1 = arith.constant 0 : i32
    %c0_i32_2 = arith.constant 0 : i32
    return %c0_i32, %c0_i32_0, %1, %c0_i32_1 : i32, i32, i32, i32
  }
  func.func @transform_1(%arg0: i32, %arg1: i32) -> (i32, i32, i32, i32) {
    %c1_i32 = arith.constant 1 : i32
    %0 = arith.muli %arg0, %c1_i32 : i32
    %1 = arith.addi %0, %arg1 : i32
    %c0_i32 = arith.constant 0 : i32
    %c0_i32_0 = arith.constant 0 : i32
    %c0_i32_1 = arith.constant 0 : i32
    %c0_i32_2 = arith.constant 0 : i32
    return %c0_i32, %c0_i32_0, %1, %c0_i32_1 : i32, i32, i32, i32
  }
  func.func @transform_2(%arg0: i32, %arg1: i32) -> (i32, i32) {
    %c0_i32 = arith.constant 0 : i32
    %c0_i32_0 = arith.constant 0 : i32
    return %arg0, %c0_i32 : i32, i32
  }
}

</mosaic_0001>

<llo_original>
// kernel: tpu_custom_call.1
$region0: #{tpu_custom_call.1}
  #allocation0 [shape = 'u32[]', space=smem, size = 0x4, offset = 0x4, fixed_abs, tag = 'smem constant byte address 0x4 - core index']
  #allocation1 [shape = 'u32[72,128]{1,0:T(1,128)}', space=vmem, size = 0x9000, scoped, tag = 'internal scratch']
  #allocation2 [shape = 'f32[1,128]{1,0:T(1,128)}', space=vmem, size = 0x200, scoped, tag = 'scratch operand']
  %s0 = inlined_call_operand.hbm [shape: f32[1,1,2,128], index: 0, kind: input, shape index: {}]
  %s1 = inlined_call_operand.hbm [shape: f32[1,1,2,128], index: 1, kind: input, shape index: {}]
  %s2 = inlined_call_operand.hbm [shape: f32[1,1], index: 2, kind: output, shape index: {}]
  %s3 = sld [smem:[#allocation0]]
  $region34: #{tpu_custom_call.1} parent=0
    _
  %s5 = ssub.s32 1, %s3
  %s6 = scalar_select 0, %s5, %s3
  $region1: #{tpu_custom_call.1} parent=0
    #allocation3 [shape = 'u8[1024]{0}', space=vmem, size = 0x400, scoped, tag = 'input window, operand 0, single buffered']
    #allocation4 [shape = 's32[1]{0}', space=sflag, size = 0x4, scoped, tag = 'scoped memory for tpu_custom_call.1']
    #allocation5 [shape = 's32[1]{0}', space=sflag, size = 0x4, scoped, tag = 'scoped memory for tpu_custom_call.1']
    #allocation6 [shape = 'u8[1024]{0}', space=vmem, size = 0x400, scoped, tag = 'input window, operand 1, single buffered']
    #allocation7 [shape = 's32[1]{0}', space=sflag, size = 0x4, scoped, tag = 'scoped memory for tpu_custom_call.1']
    #allocation8 [shape = 'u8[512]{0}', space=smem, size = 0x200, scoped, tag = 'output window, operand 0, single buffered']
    %7 = vsyncpa [#allocation4], 0
    %8 = vsyncpa [#allocation7], 0
    %9 = vsyncpa [#allocation5], 0
    // Predicated region
    $region2: #{tpu_custom_call.1} parent=1 // pred_check
      _
    $region3: #{tpu_custom_call.1} parent=1 // pred_check_branch
      %11 = sbr.rel (0) target = $region5
    $region4: #{tpu_custom_call.1} parent=1 // pred_region
      %s12 = sadd.s32 0, 0
      %14 = vsyncadd [#allocation4], 0
      %s15 = smul.addr %s12, 2
      %s16 = scalar_lea.hbm %s0, %s15
      %s18 = sshll.u32 %s16, 4
      %s19 = int_to_ptr.hbm [resolvable:$true] %s18
      %s20 = sshll.u32 [#allocation3], 4
      %s21 = int_to_ptr.vmem [resolvable:$true] %s20
      %23 = dma.hbm_to_vmem [thread:$0]  %s19, 32, %s21, [#allocation4]
    $region5: #{tpu_custom_call.1} parent=1 // pred_fallthru
      _
    // Predicated region
    $region6: #{tpu_custom_call.1} parent=1 // pred_check
      _
    $region7: #{tpu_custom_call.1} parent=1 // pred_check_branch
      %25 = sbr.rel (0) target = $region9
    $region8: #{tpu_custom_call.1} parent=1 // pred_region
      %s26 = sadd.s32 0, 0
      %28 = vsyncadd [#allocation7], 0
      %s29 = smul.addr %s26, 2
      %s30 = scalar_lea.hbm %s1, %s29
      %s32 = sshll.u32 %s30, 4
      %s33 = int_to_ptr.hbm [resolvable:$true] %s32
      %s34 = sshll.u32 [#allocation6], 4
      %s35 = int_to_ptr.vmem [resolvable:$true] %s34
      %37 = dma.hbm_to_vmem [thread:$0]  %s33, 32, %s35, [#allocation7]
    $region9: #{tpu_custom_call.1} parent=1 // pred_fallthru
      _
    // Predicated region
    $region10: #{tpu_custom_call.1} parent=1 // pred_check
      _
    $region11: #{tpu_custom_call.1} parent=1 // pred_check_branch
      %39 = sbr.rel (0) target = $region13
    $region12: #{tpu_custom_call.1} parent=1 // pred_region
      %41 = dma.done [#allocation4], 32
    $region13: #{tpu_custom_call.1} parent=1 // pred_fallthru
      _
    // Predicated region
    $region14: #{tpu_custom_call.1} parent=1 // pred_check
      _
    $region15: #{tpu_custom_call.1} parent=1 // pred_check_branch
      %43 = sbr.rel (0) target = $region17
    $region16: #{tpu_custom_call.1} parent=1 // pred_region
      %45 = dma.done [#allocation7], 32
    $region17: #{tpu_custom_call.1} parent=1 // pred_fallthru
      _
    %s46 = sadd.s32 0, 0
    %s47 = sadd.s32 0, 0
    %p48 = scmp.eq.s32.totalorder 0, 0
    // Predicated region
    $region18: #{tpu_custom_call.1} parent=1 // pred_check
      %p49 = pneg %p48
    $region19: #{tpu_custom_call.1} parent=1 // pred_check_branch
      %51 = sbr.rel (%p49) target = $region21
    $region20: #{tpu_custom_call.1} parent=1 // pred_region
      %52 = vst [vmem:[#allocation2] sm:$0x1] 0.0
    $region21: #{tpu_custom_call.1} parent=1 // pred_fallthru
      _
    %v53 = vld [vmem:[#allocation3] sm:$0x3]
    %v54 = vld [vmem:[#allocation6] sm:$0x3]
    %v55 = vsub.f32 %v53, %v54
    %v56 = vand.u32 2147483647, %v55
    %v57 = vld [vmem:[#allocation2] sm:$0x1]
    %vm58 = vcmask 1041408
    %v59 = vsel %vm58, %v56, 0.0
    %v60 = vrot.slane %v59, 4
    %v61 = vadd.f32 %v59, %v60
    %v62 = vrot.slane %v61, 2
    %v63 = vadd.f32 %v61, %v62
    %v64 = vrot.slane %v63, 1
    %v65 = vadd.f32 %v63, %v64
    %v66 = vadd.f32 %v57, %v65
    %67 = vst [vmem:[#allocation2] sm:$0x1] %v66
    // Predicated region
    $region22: #{tpu_custom_call.1} parent=1 // pred_check
      %p68 = pneg %p48
    $region23: #{tpu_custom_call.1} parent=1 // pred_check_branch
      %70 = sbr.rel (%p68) target = $region25
    $region24: #{tpu_custom_call.1} parent=1 // pred_region
      %v71 = vld [vmem:[#allocation2] sm:$0x1]
      %vm72 = vcmask 1040384
      %v73 = vsel %vm72, %v71, 0.0
      %74 = vadd.xlane.f32.xlu0 %v73
      %v75 = vpop.xlane.xlu0 %74
      %v76 = vrot.slane %v75, 4
      %v77 = vadd.f32 %v75, %v76
      %v78 = vrot.slane %v77, 2
      %v79 = vadd.f32 %v77, %v78
      %v80 = vrot.slane %v79, 1
      %v81 = vadd.f32 %v79, %v80
      %s82 = vtos %v81
      %s83 = smul.f32 %s82, 0.00390625
      %s84 = scalar_lea.smem [#allocation8], 0
      %85 = sst [smem:[%s84]] %s83
    $region25: #{tpu_custom_call.1} parent=1 // pred_fallthru
      _
    // Predicated region
    $region26: #{tpu_custom_call.1} parent=1 // pred_check
      _
    $region27: #{tpu_custom_call.1} parent=1 // pred_check_branch
      %87 = sbr.rel (0) target = $region29
    $region28: #{tpu_custom_call.1} parent=1 // pred_region
      %89 = vsyncadd [#allocation5], 0
      %s91 = sshll.u32 %s2, 4
      %s92 = int_to_ptr.hbm [resolvable:$true] %s91
      %94 = dma.smem_to_hbm [#allocation8], 16, %s92, [#allocation5]
    $region29: #{tpu_custom_call.1} parent=1 // pred_fallthru
      _
    // Predicated region
    $region30: #{tpu_custom_call.1} parent=1 // pred_check
      _
    $region31: #{tpu_custom_call.1} parent=1 // pred_check_branch
      %96 = sbr.rel (0) target = $region33
    $region32: #{tpu_custom_call.1} parent=1 // pred_region
      %98 = dma.done [#allocation5], 16
    $region33: #{tpu_custom_call.1} parent=1 // pred_fallthru
      _
    %99 = sfence
    %100 = vsyncpa [#allocation4], 1
    %101 = vsyncpa [#allocation7], 1
    %102 = vsyncpa [#allocation5], 1

</llo_original>
